<compile_context>
chip_gen: v6e
topology: v6e:2x2x1
jax: 0.10.0
libtpu: 0.0.40
codegen_flags: <defaults>
</compile_context>

<pallas_src>
import jax
import jax.numpy as jnp
from jax.experimental import pallas as pl
from jax.experimental.pallas import tpu as pltpu


def _round_up(x, m):
    return ((x + m - 1) // m) * m


# ----------------------------------------------------------------------------
# Kernel
# ----------------------------------------------------------------------------
def neumf_kernel(u_ref, it_ref, ib_ref,
                 w1u_ref, w1i_ref, w1b_ref, b1_ref,
                 wog_ref, wom_ref, bo_ref, out_ref):
    # Merged user/item tiles: lanes [:mf] = GMF embedding, [mf:] = MLP embedding.
    u = u_ref[...]                                                   # (TB, mf+half) bf16
    it = it_ref[...]                                                 # (TB, mf+half) bf16

    # ---- GMF branch: elementwise product on the VPU.  Done in f32 so it also
    # lowers cleanly on v5e (no bf16 VALU); the MLP-lane garbage is masked later
    # by the zero-padded wog row. ----
    gmf = u.astype(jnp.float32) * it.astype(jnp.float32)             # (TB, mf+half) f32

    # ---- MLP branch: split-K matmuls replace concat([um, im, ib]) @ W1.
    # w1u / w1i are zero over the GMF lanes so the full merged tiles are fed
    # without any lane slicing. ----
    h = jnp.dot(u, w1u_ref[...], preferred_element_type=jnp.float32)
    h = h + jnp.dot(it, w1i_ref[...], preferred_element_type=jnp.float32)
    h = h + jnp.dot(ib_ref[...], w1b_ref[...], preferred_element_type=jnp.float32)
    h = jnp.maximum(h + b1_ref[...], 0.0)                            # (TB, H); dropout = identity (eval)

    # ---- Final Linear: y = concat([gmf, h]) @ Wo^T + bo, computed as
    # broadcast-multiply + cross-lane reduce (VPU + XLU, both otherwise idle).
    # wog_row is zero over the merged MLP lanes -> masks the GMF-tile garbage. ----
    y = (jnp.sum(gmf * wog_ref[...], axis=1, keepdims=True)
         + jnp.sum(h * wom_ref[...], axis=1, keepdims=True)
         + bo_ref[0, 0])                                             # (TB, 1) f32
    out_ref[...] = y.astype(out_ref.dtype)


# ----------------------------------------------------------------------------
# One-time parameter layout prep (merge tables, split/pad weights, cast bf16)
# ----------------------------------------------------------------------------
def prepare_params(params, *, table_dtype=jnp.bfloat16):
    mf = params["user_emb_gmf"].shape[1]
    half = params["user_emb_mlp"].shape[1]
    H = params["mlp_b"].shape[0]

    # Merged per-entity tables: [gmf | mlp] -> (N, mf + half) (== 128 by default).
    user_tbl = jnp.concatenate([params["user_emb_gmf"], params["user_emb_mlp"]], axis=1)
    item_tbl = jnp.concatenate([params["item_emb_gmf"], params["item_emb_mlp"]], axis=1)

    w1_t = params["mlp_w"].T                                         # (2*half + bert, H)
    zeros_mf = jnp.zeros((mf, H), w1_t.dtype)
    w1_user = jnp.concatenate([zeros_mf, w1_t[:half]], axis=0)       # (mf+half, H), zero over GMF lanes
    w1_item = jnp.concatenate([zeros_mf, w1_t[half:2 * half]], axis=0)
    w1_bert = w1_t[2 * half:]                                        # (bert, H)

    wo = params["out_w"][0]                                          # (mf + H,)
    wog_row = jnp.concatenate([wo[:mf], jnp.zeros((half,), wo.dtype)])[None, :]  # (1, mf+half)
    wom_row = wo[mf:][None, :]                                       # (1, H)

    return {
        "user_table": user_tbl.astype(table_dtype),                  # (U, mf+half) bf16
        "item_table": item_tbl.astype(table_dtype),                  # (I, mf+half) bf16
        "bert_table": params["item_bert_matrix"].astype(table_dtype),  # (I, bert)  bf16
        "w1_user": w1_user.astype(table_dtype),
        "w1_item": w1_item.astype(table_dtype),
        "w1_bert": w1_bert.astype(table_dtype),
        "b1_row": params["mlp_b"][None, :].astype(jnp.float32),      # (1, H)      f32
        "wog_row": wog_row.astype(jnp.float32),                      # (1, mf+half) f32
        "wom_row": wom_row.astype(jnp.float32),                      # (1, H)      f32
        "bo": params["out_b"].reshape(1, 1).astype(jnp.float32),     # (1, 1) -> SMEM
    }


# ----------------------------------------------------------------------------
# Forward wrapper
# ----------------------------------------------------------------------------
def neumf_forward(prepared, user_idx, item_idx, *, block_rows=1024, act_buffers=2):
    B = user_idx.shape[0]
    merged = prepared["user_table"].shape[1]                         # mf + mlp_half
    bert_dim = prepared["bert_table"].shape[1]
    H = prepared["b1_row"].shape[1]
    act_dtype = prepared["user_table"].dtype
    elem = jnp.dtype(act_dtype).itemsize

    # ---- batch tiling: big tiles, but always >=2 so both v7x TCs get work ----
    if B <= block_rows:
        TB = max(16, _round_up(pl.cdiv(B, 2), 16))                   # mult of 16: bf16 sublane packing
        num_tiles = 2
    else:
        TB = _round_up(block_rows, 16)
        num_tiles = pl.cdiv(B, TB)
    B_pad = num_tiles * TB

    pad = B_pad - B
    u_idx = jnp.pad(user_idx, (0, pad))                              # pad rows gather index 0
    i_idx = jnp.pad(item_idx, (0, pad))

    # ---- glue (plain JAX): merged-table gathers; no concat, fed separately ----
    u = jnp.take(prepared["user_table"], u_idx, axis=0)              # (B_pad, merged)   bf16
    it = jnp.take(prepared["item_table"], i_idx, axis=0)             # (B_pad, merged)   bf16
    ib = jnp.take(prepared["bert_table"], i_idx, axis=0)             # (B_pad, bert_dim) bf16

    def act_spec(d):
        if act_buffers != 2:                                         # deeper buffering (v5e tuning)
            return pl.BlockSpec((TB, d), lambda i: (i, 0),
                                pipeline_mode=pl.Buffered(act_buffers))
        return pl.BlockSpec((TB, d), lambda i: (i, 0))

    def wgt_spec(r, c):                                              # resident (constant index) block
        return pl.BlockSpec((r, c), lambda i: (0, 0))

    # ---- cost / VMEM sizing ----
    act_cols = 2 * merged + bert_dim
    flops = int(2 * B_pad * H * act_cols + B_pad * (3 * merged + 2 * H))
    bytes_accessed = int(B_pad * act_cols * elem + B_pad * 4
                         + act_cols * H * elem + 4 * (2 * H + merged + 1))
    est_vmem = (max(act_buffers, 2) * TB * act_cols * elem           # activation buffers
                + 2 * TB * 4                                         # output buffers
                + 2 * (act_cols * H * elem + 4 * (2 * H + merged + 1)))
    vmem_limit = int(min(48 * 1024 * 1024, max(16 * 1024 * 1024, 4 * est_vmem)))

    out = pl.pallas_call(
        neumf_kernel,
        out_shape=jax.ShapeDtypeStruct((B_pad, 1), jnp.float32),
        grid=(num_tiles,),
        in_specs=[
            act_spec(merged), act_spec(merged), act_spec(bert_dim),  # u, it, ib
            wgt_spec(merged, H), wgt_spec(merged, H), wgt_spec(bert_dim, H),  # W1 splits
            wgt_spec(1, H),                                          # b1
            wgt_spec(1, merged), wgt_spec(1, H),                     # wo rows (gmf-padded, mlp)
            pl.BlockSpec(memory_space=pltpu.MemorySpace.SMEM),       # bo scalar
        ],
        out_specs=pl.BlockSpec((TB, 1), lambda i: (i, 0)),
        compiler_params=pltpu.CompilerParams(
            dimension_semantics=("parallel",),
            vmem_limit_bytes=vmem_limit),
        cost_estimate=pl.CostEstimate(flops=flops, transcendentals=0,
                                      bytes_accessed=bytes_accessed),
    )(u, it, ib,
      prepared["w1_user"], prepared["w1_item"], prepared["w1_bert"],
      prepared["b1_row"], prepared["wog_row"], prepared["wom_row"],
      prepared["bo"])

    return out[:B]                                                   # (B, 1) f32


# ----------------------------------------------------------------------------
# Reference (pure JAX, mirrors the PyTorch module) + helpers
# ----------------------------------------------------------------------------
def reference_forward(params, user_idx, item_idx):
    ug = params["user_emb_gmf"][user_idx]
    ig = params["item_emb_gmf"][item_idx]
    gmf = ug * ig
    um = params["user_emb_mlp"][user_idx]
    im = params["item_emb_mlp"][item_idx]
    ib = params["item_bert_matrix"][item_idx]
    mlp_in = jnp.concatenate([um, im, ib], axis=-1)
    h = jnp.maximum(mlp_in @ params["mlp_w"].T + params["mlp_b"], 0.0)
    final_in = jnp.concatenate([gmf, h], axis=-1)
    return final_in @ params["out_w"].T + params["out_b"]


def quantize_like_kernel(params):
    """Round the tensors the kernel stores in bf16, for a like-for-like reference."""
    q = dict(params)
    for k in ("user_emb_gmf", "item_emb_gmf", "user_emb_mlp", "item_emb_mlp",
              "item_bert_matrix", "mlp_w"):
        q[k] = params[k].astype(jnp.bfloat16).astype(jnp.float32)
    return q


def init_params(key, num_users, num_items, bert_dim, mf_dim=64, mlp_dims=(128, 64)):
    ks = jax.random.split(key, 9)
    mlp_half = mlp_dims[0] // 2
    mlp_in_dim = mlp_dims[0] + bert_dim
    total_in = mf_dim + mlp_dims[1]
    return {
        "user_emb_gmf": jax.random.normal(ks[0], (num_users, mf_dim), jnp.float32) * 0.1,
        "item_emb_gmf": jax.random.normal(ks[1], (num_items, mf_dim), jnp.float32) * 0.1,
        "user_emb_mlp": jax.random.normal(ks[2], (num_users, mlp_half), jnp.float32) * 0.1,
        "item_emb_mlp": jax.random.normal(ks[3], (num_items, mlp_half), jnp.float32) * 0.1,
        "item_bert_matrix": jax.random.normal(ks[4], (num_items, bert_dim), jnp.float32),
        "mlp_w": jax.random.normal(ks[5], (mlp_dims[1], mlp_in_dim), jnp.float32) * 0.05,
        "mlp_b": jax.random.normal(ks[6], (mlp_dims[1],), jnp.float32) * 0.01,
        "out_w": jax.random.normal(ks[7], (1, total_in), jnp.float32) * 0.05,
        "out_b": jax.random.normal(ks[8], (1,), jnp.float32) * 0.01,
    }


if __name__ == "__main__":
    num_users, num_items = 10, 12
    mf_dim, mlp_dims, bert_dim = 64, (128, 64), 32

    key = jax.random.PRNGKey(0)
    pkey, ukey, ikey, ukey2, ikey2 = jax.random.split(key, 5)
    params = init_params(pkey, num_users, num_items, bert_dim, mf_dim, mlp_dims)
    prepared = prepare_params(params)
    params_q = quantize_like_kernel(params)      # reference with the same bf16-stored values

    fwd = jax.jit(neumf_forward, static_argnames=("block_rows", "act_buffers"))

    # ---- small-batch check (2 tiles, exercises batch padding) ----
    batch = 8
    user_idx = jax.random.randint(ukey, (batch,), 0, num_users, dtype=jnp.int32)
    item_idx = jax.random.randint(ikey, (batch,), 0, num_items, dtype=jnp.int32)

    out = jax.block_until_ready(fwd(prepared, user_idx, item_idx))
    ref = reference_forward(params_q, user_idx, item_idx)
    assert out.shape == (batch, 1)
    assert jnp.allclose(out, ref, atol=1e-2, rtol=1e-2), "mismatch vs reference (small batch)"

    # ---- multi-tile check (exercises grid, padding, resident weight blocks) ----
    batch2 = 600
    user_idx2 = jax.random.randint(ukey2, (batch2,), 0, num_users, dtype=jnp.int32)
    item_idx2 = jax.random.randint(ikey2, (batch2,), 0, num_items, dtype=jnp.int32)

    out2 = jax.block_until_ready(fwd(prepared, user_idx2, item_idx2, block_rows=256))
    ref2 = reference_forward(params_q, user_idx2, item_idx2)
    assert out2.shape == (batch2, 1)
    assert jnp.allclose(out2, ref2, atol=1e-2, rtol=1e-2), "mismatch vs reference (multi tile)"

    print("KERNEL_OK")
</pallas_src>

<mosaic_0001>
module attributes {stable_mosaic.version = 11 : i64} {
  func.func @neumf_kernel(%arg0: i32, %arg1: memref<16x128xbf16, #tpu.memory_space<vmem>>, %arg2: memref<16x128xbf16, #tpu.memory_space<vmem>>, %arg3: memref<16x32xbf16, #tpu.memory_space<vmem>>, %arg4: memref<128x64xbf16, #tpu.memory_space<vmem>>, %arg5: memref<128x64xbf16, #tpu.memory_space<vmem>>, %arg6: memref<32x64xbf16, #tpu.memory_space<vmem>>, %arg7: memref<1x64xf32, #tpu.memory_space<vmem>>, %arg8: memref<1x128xf32, #tpu.memory_space<vmem>>, %arg9: memref<1x64xf32, #tpu.memory_space<vmem>>, %arg10: memref<1x1xf32, #tpu.memory_space<smem>>, %arg11: memref<16x1xf32, #tpu.memory_space<vmem>>) attributes {dimension_semantics = [#tpu.dimension_semantics<parallel>], iteration_bounds = array<i64: 2>, scalar_prefetch = 0 : i64, scratch_operands = 0 : i64, tpu.core_type = #tpu.core_type<tc>, window_params = [{transform_indices = @transform_0, window_bounds = array<i64: 16, 128>}, {transform_indices = @transform_1, window_bounds = array<i64: 16, 128>}, {transform_indices = @transform_2, window_bounds = array<i64: 16, 32>}, {pipeline_mode = #tpu.pipeline_mode<synchronous>, transform_indices = @transform_3, window_bounds = array<i64: 128, 64>}, {pipeline_mode = #tpu.pipeline_mode<synchronous>, transform_indices = @transform_4, window_bounds = array<i64: 128, 64>}, {pipeline_mode = #tpu.pipeline_mode<synchronous>, transform_indices = @transform_5, window_bounds = array<i64: 32, 64>}, {pipeline_mode = #tpu.pipeline_mode<synchronous>, transform_indices = @transform_6, window_bounds = array<i64: 1, 64>}, {pipeline_mode = #tpu.pipeline_mode<synchronous>, transform_indices = @transform_7, window_bounds = array<i64: 1, 128>}, {pipeline_mode = #tpu.pipeline_mode<synchronous>, transform_indices = @transform_8, window_bounds = array<i64: 1, 64>}, {transform_indices = @transform_9, window_bounds = array<i64: 1, 1>}, {transform_indices = @transform_10, window_bounds = array<i64: 16, 1>}]} {
    %c0 = arith.constant 0 : index
    %c0_0 = arith.constant 0 : index
    %0 = vector.load %arg1[%c0, %c0_0] : memref<16x128xbf16, #tpu.memory_space<vmem>>, vector<16x128xbf16>
    %c0_1 = arith.constant 0 : index
    %c0_2 = arith.constant 0 : index
    %1 = vector.load %arg2[%c0_1, %c0_2] : memref<16x128xbf16, #tpu.memory_space<vmem>>, vector<16x128xbf16>
    %2 = arith.extf %0 : vector<16x128xbf16> to vector<16x128xf32>
    %3 = arith.extf %1 : vector<16x128xbf16> to vector<16x128xf32>
    %4 = arith.mulf %2, %3 : vector<16x128xf32>
    %c0_3 = arith.constant 0 : index
    %c0_4 = arith.constant 0 : index
    %5 = vector.load %arg4[%c0_3, %c0_4] : memref<128x64xbf16, #tpu.memory_space<vmem>>, vector<128x64xbf16>
    %cst = arith.constant dense<0.000000e+00> : vector<16x64xf32>
    %6 = tpu.matmul %0, %5, %cst {dimension_numbers = #tpu.dot_dimension_numbers<[1], [0], [0], [1], [0, 0, 1, 1], [], []>} : vector<16x128xbf16>, vector<128x64xbf16>, vector<16x64xf32> -> vector<16x64xf32>
    %c0_5 = arith.constant 0 : index
    %c0_6 = arith.constant 0 : index
    %7 = vector.load %arg5[%c0_5, %c0_6] : memref<128x64xbf16, #tpu.memory_space<vmem>>, vector<128x64xbf16>
    %cst_7 = arith.constant dense<0.000000e+00> : vector<16x64xf32>
    %8 = tpu.matmul %1, %7, %cst_7 {dimension_numbers = #tpu.dot_dimension_numbers<[1], [0], [0], [1], [0, 0, 1, 1], [], []>} : vector<16x128xbf16>, vector<128x64xbf16>, vector<16x64xf32> -> vector<16x64xf32>
    %9 = arith.addf %6, %8 : vector<16x64xf32>
    %c0_8 = arith.constant 0 : index
    %c0_9 = arith.constant 0 : index
    %10 = vector.load %arg3[%c0_8, %c0_9] : memref<16x32xbf16, #tpu.memory_space<vmem>>, vector<16x32xbf16>
    %c0_10 = arith.constant 0 : index
    %c0_11 = arith.constant 0 : index
    %11 = vector.load %arg6[%c0_10, %c0_11] : memref<32x64xbf16, #tpu.memory_space<vmem>>, vector<32x64xbf16>
    %cst_12 = arith.constant dense<0.000000e+00> : vector<16x64xf32>
    %12 = tpu.matmul %10, %11, %cst_12 {dimension_numbers = #tpu.dot_dimension_numbers<[1], [0], [0], [1], [0, 0, 1, 1], [], []>} : vector<16x32xbf16>, vector<32x64xbf16>, vector<16x64xf32> -> vector<16x64xf32>
    %13 = arith.addf %9, %12 : vector<16x64xf32>
    %c0_13 = arith.constant 0 : index
    %c0_14 = arith.constant 0 : index
    %14 = vector.load %arg7[%c0_13, %c0_14] : memref<1x64xf32, #tpu.memory_space<vmem>>, vector<1x64xf32>
    %15 = vector.broadcast %14 : vector<1x64xf32> to vector<16x64xf32>
    %16 = arith.addf %13, %15 : vector<16x64xf32>
    %cst_15 = arith.constant 0.000000e+00 : f32
    %17 = vector.broadcast %cst_15 : f32 to vector<16x64xf32>
    %18 = arith.maximumf %16, %17 : vector<16x64xf32>
    %c0_16 = arith.constant 0 : index
    %c0_17 = arith.constant 0 : index
    %19 = vector.load %arg8[%c0_16, %c0_17] : memref<1x128xf32, #tpu.memory_space<vmem>>, vector<1x128xf32>
    %20 = vector.broadcast %19 : vector<1x128xf32> to vector<16x128xf32>
    %21 = arith.mulf %4, %20 : vector<16x128xf32>
    %cst_18 = arith.constant dense<0.000000e+00> : vector<16xf32>
    %22 = vector.multi_reduction <add>, %21, %cst_18 [1] : vector<16x128xf32> to vector<16xf32>
    %23 = vector.shape_cast %22 : vector<16xf32> to vector<16x1xf32>
    %c0_19 = arith.constant 0 : index
    %c0_20 = arith.constant 0 : index
    %24 = vector.load %arg9[%c0_19, %c0_20] : memref<1x64xf32, #tpu.memory_space<vmem>>, vector<1x64xf32>
    %25 = vector.broadcast %24 : vector<1x64xf32> to vector<16x64xf32>
    %26 = arith.mulf %18, %25 : vector<16x64xf32>
    %cst_21 = arith.constant dense<0.000000e+00> : vector<16xf32>
    %27 = vector.multi_reduction <add>, %26, %cst_21 [1] : vector<16x64xf32> to vector<16xf32>
    %28 = vector.shape_cast %27 : vector<16xf32> to vector<16x1xf32>
    %29 = arith.addf %23, %28 : vector<16x1xf32>
    %c0_22 = arith.constant 0 : index
    %c0_23 = arith.constant 0 : index
    %30 = memref.load %arg10[%c0_22, %c0_23] : memref<1x1xf32, #tpu.memory_space<smem>>
    %31 = vector.broadcast %30 : f32 to vector<16x1xf32>
    %32 = arith.addf %29, %31 : vector<16x1xf32>
    %c0_24 = arith.constant 0 : index
    %c0_25 = arith.constant 0 : index
    %33 = vector.load %arg11[%c0_24, %c0_25] : memref<16x1xf32, #tpu.memory_space<vmem>>, vector<16x1xf32>
    tpu.vector_store %arg11[%c0_24, %c0_25], %32 {strides = array<i32>} : memref<16x1xf32, #tpu.memory_space<vmem>>, vector<16x1xf32>,
    return
  }
  func.func @transform_0(%arg0: i32) -> (i32, i32) {
    %c0_i32 = arith.constant 0 : i32
    %c0_i32_0 = arith.constant 0 : i32
    return %arg0, %c0_i32 : i32, i32
  }
  func.func @transform_1(%arg0: i32) -> (i32, i32) {
    %c0_i32 = arith.constant 0 : i32
    %c0_i32_0 = arith.constant 0 : i32
    return %arg0, %c0_i32 : i32, i32
  }
  func.func @transform_2(%arg0: i32) -> (i32, i32) {
    %c0_i32 = arith.constant 0 : i32
    %c0_i32_0 = arith.constant 0 : i32
    return %arg0, %c0_i32 : i32, i32
  }
  func.func @transform_3(%arg0: i32) -> (i32, i32) {
    %c0_i32 = arith.constant 0 : i32
    %c0_i32_0 = arith.constant 0 : i32
    %c0_i32_1 = arith.constant 0 : i32
    return %c0_i32, %c0_i32_0 : i32, i32
  }
  func.func @transform_4(%arg0: i32) -> (i32, i32) {
    %c0_i32 = arith.constant 0 : i32
    %c0_i32_0 = arith.constant 0 : i32
    %c0_i32_1 = arith.constant 0 : i32
    return %c0_i32, %c0_i32_0 : i32, i32
  }
  func.func @transform_5(%arg0: i32) -> (i32, i32) {
    %c0_i32 = arith.constant 0 : i32
    %c0_i32_0 = arith.constant 0 : i32
    %c0_i32_1 = arith.constant 0 : i32
    return %c0_i32, %c0_i32_0 : i32, i32
  }
  func.func @transform_6(%arg0: i32) -> (i32, i32) {
    %c0_i32 = arith.constant 0 : i32
    %c0_i32_0 = arith.constant 0 : i32
    %c0_i32_1 = arith.constant 0 : i32
    return %c0_i32, %c0_i32_0 : i32, i32
  }
  func.func @transform_7(%arg0: i32) -> (i32, i32) {
    %c0_i32 = arith.constant 0 : i32
    %c0_i32_0 = arith.constant 0 : i32
    %c0_i32_1 = arith.constant 0 : i32
    return %c0_i32, %c0_i32_0 : i32, i32
  }
  func.func @transform_8(%arg0: i32) -> (i32, i32) {
    %c0_i32 = arith.constant 0 : i32
    %c0_i32_0 = arith.constant 0 : i32
    %c0_i32_1 = arith.constant 0 : i32
    return %c0_i32, %c0_i32_0 : i32, i32
  }
  func.func @transform_9(%arg0: i32) -> (i32, i32) {
    %c0_i32 = arith.constant 0 : i32
    %c0_i32_0 = arith.constant 0 : i32
    %c0_i32_1 = arith.constant 0 : i32
    return %c0_i32, %c0_i32_0 : i32, i32
  }
  func.func @transform_10(%arg0: i32) -> (i32, i32) {
    %c0_i32 = arith.constant 0 : i32
    %c0_i32_0 = arith.constant 0 : i32
    return %arg0, %c0_i32 : i32, i32
  }
}

</mosaic_0001>

<llo_original>
// kernel: neumf_forward.1
$region0: #{neumf_forward.1}
  #allocation0 [shape = 'u32[]', space=smem, size = 0x4, offset = 0x4, fixed_abs, tag = 'smem constant byte address 0x4 - core index']
  #allocation1 [shape = 'u32[144,128]{1,0:T(1,128)}', space=vmem, size = 0x12000, scoped, tag = 'internal scratch']
  #allocation2 [shape = 'f32[1,1]{1,0:T(1,128)S(6)}', space=smem, size = 0x200, scoped, tag = 'scoped memory for neumf_forward.1']
  %s0 = inlined_call_operand.vmem [shape: bf16[32,128], index: 0, kind: input, shape index: {}]
  %s1 = inlined_call_operand.vmem [shape: bf16[32,128], index: 1, kind: input, shape index: {}]
  %s2 = inlined_call_operand.vmem [shape: bf16[32,32], index: 2, kind: input, shape index: {}]
  %s3 = inlined_call_operand.vmem [shape: bf16[128,64], index: 3, kind: input, shape index: {}]
  %s4 = inlined_call_operand.vmem [shape: bf16[128,64], index: 4, kind: input, shape index: {}]
  %s5 = inlined_call_operand.vmem [shape: bf16[32,64], index: 5, kind: input, shape index: {}]
  %s6 = inlined_call_operand.vmem [shape: f32[1,64], index: 6, kind: input, shape index: {}]
  %s7 = inlined_call_operand.vmem [shape: f32[1,128], index: 7, kind: input, shape index: {}]
  %s8 = inlined_call_operand.vmem [shape: f32[1,64], index: 8, kind: input, shape index: {}]
  %s9 = inlined_call_operand.<no memory space> [shape: f32[1,1], index: 9, kind: input, shape index: {}]
  %s10 = inlined_call_operand.vmem [shape: f32[32,1], index: 10, kind: output, shape index: {}]
  %s11 = sld [smem:[#allocation0]]
  $region73: #{neumf_forward.1} parent=0
    _
  %s13 = ssub.s32 1, %s11
  %s14 = scalar_select 0, %s13, %s11
  %15 = sst [smem:[#allocation2]] %s9
  loop: start=0, step=1, limit=4
  $region2: #{neumf_forward.1} parent=0 // loop_pre_header
    _
  $region3: #{neumf_forward.1} parent=0 // loop_header
    %s17 = sphi 0, %s21
    %p18 = scmp.ge.s32.totalorder %s17, 4
    %s27 = sphi 0, %s29
    %s30 = sphi 0, %s27
    %s31 = sphi 0, %s30
    %s47 = sphi 0, %s31
    %s53 = sphi 0, %s55
    %s56 = sphi 0, %s53
    %s57 = sphi 0, %s56
    %s73 = sphi 0, %s57
    %s79 = sphi 0, %s81
    %s82 = sphi 0, %s79
    %s83 = sphi 0, %s82
    %s99 = sphi 0, %s83
    %s103 = sphi 0, %s103
    %s105 = sphi 0, %s103
    %s106 = sphi 0, %s105
    %s120 = sphi 0, %s106
    %s124 = sphi 0, %s124
    %s126 = sphi 0, %s124
    %s127 = sphi 0, %s126
    %s141 = sphi 0, %s127
    %s145 = sphi 0, %s145
    %s147 = sphi 0, %s145
    %s148 = sphi 0, %s147
    %s162 = sphi 0, %s148
    %s166 = sphi 0, %s166
    %s168 = sphi 0, %s166
    %s169 = sphi 0, %s168
    %s183 = sphi 0, %s169
    %s187 = sphi 0, %s187
    %s189 = sphi 0, %s187
    %s190 = sphi 0, %s189
    %s204 = sphi 0, %s190
    %s208 = sphi 0, %s208
    %s210 = sphi 0, %s208
    %s211 = sphi 0, %s210
    %s225 = sphi 0, %s211
    %s229 = sphi 0, %s229
    %s231 = sphi 0, %s229
    %s232 = sphi 0, %s231
    %s246 = sphi 0, %s232
    %s252 = sphi 0, %s254
    %s255 = sphi 0, %s252
    %s256 = sphi 0, %s255
    %s272 = sphi 0, %s256
  $region4: #{neumf_forward.1} parent=0 // loop_header_branch
    %20 = sbr.rel (%p18) target = $region8
  $region5: #{neumf_forward.1} parent=0 // loop_body
    %s22 = ssub.s32 %s17, 1
    %s23 = ssub.s32 %s17, 2
    %s24 = sadd.s32 %s17, 1
    %s25 = ssub.s32 %s17, %s24
    %p26 = scmp.eq.s32.totalorder %s25, 0
    %s28 = sadd.s32 %s27, 1
    %s29 = scalar_select %p26, %s27, %s28
    %p32 = pneg %p26
    %p33 = scmp.eq.s32.totalorder %s17, 1
    %p34 = por %p32, %p33
    %p35 = scmp.ne.s32.totalorder %s27, %s30
    %p36 = scmp.eq.s32.totalorder %s17, 0
    %p37 = por %p35, %p36
    %p38 = scmp.ne.s32.totalorder %s27, %s30
    %p39 = scmp.eq.s32.totalorder %s22, 1
    %p40 = por %p38, %p39
    %p41 = scmp.ne.s32.totalorder %s30, %s31
    %p42 = scmp.eq.s32.totalorder %s22, 0
    %p43 = por %p41, %p42
    %p44 = scmp.ne.s32.totalorder %s30, %s31
    %p45 = scmp.eq.s32.totalorder %s23, 1
    %p46 = por %p44, %p45
    %p48 = scmp.ne.s32.totalorder %s31, %s47
    %p49 = scmp.eq.s32.totalorder %s23, 0
    %p50 = por %p48, %p49
    %s51 = ssub.s32 %s17, %s24
    %p52 = scmp.eq.s32.totalorder %s51, 0
    %s54 = sadd.s32 %s53, 1
    %s55 = scalar_select %p52, %s53, %s54
    %p58 = pneg %p52
    %p59 = scmp.eq.s32.totalorder %s17, 1
    %p60 = por %p58, %p59
    %p61 = scmp.ne.s32.totalorder %s53, %s56
    %p62 = scmp.eq.s32.totalorder %s17, 0
    %p63 = por %p61, %p62
    %p64 = scmp.ne.s32.totalorder %s53, %s56
    %p65 = scmp.eq.s32.totalorder %s22, 1
    %p66 = por %p64, %p65
    %p67 = scmp.ne.s32.totalorder %s56, %s57
    %p68 = scmp.eq.s32.totalorder %s22, 0
    %p69 = por %p67, %p68
    %p70 = scmp.ne.s32.totalorder %s56, %s57
    %p71 = scmp.eq.s32.totalorder %s23, 1
    %p72 = por %p70, %p71
    %p74 = scmp.ne.s32.totalorder %s57, %s73
    %p75 = scmp.eq.s32.totalorder %s23, 0
    %p76 = por %p74, %p75
    %s77 = ssub.s32 %s17, %s24
    %p78 = scmp.eq.s32.totalorder %s77, 0
    %s80 = sadd.s32 %s79, 1
    %s81 = scalar_select %p78, %s79, %s80
    %p84 = pneg %p78
    %p85 = scmp.eq.s32.totalorder %s17, 1
    %p86 = por %p84, %p85
    %p87 = scmp.ne.s32.totalorder %s79, %s82
    %p88 = scmp.eq.s32.totalorder %s17, 0
    %p89 = por %p87, %p88
    %p90 = scmp.ne.s32.totalorder %s79, %s82
    %p91 = scmp.eq.s32.totalorder %s22, 1
    %p92 = por %p90, %p91
    %p93 = scmp.ne.s32.totalorder %s82, %s83
    %p94 = scmp.eq.s32.totalorder %s22, 0
    %p95 = por %p93, %p94
    %p96 = scmp.ne.s32.totalorder %s82, %s83
    %p97 = scmp.eq.s32.totalorder %s23, 1
    %p98 = por %p96, %p97
    %p100 = scmp.ne.s32.totalorder %s83, %s99
    %p101 = scmp.eq.s32.totalorder %s23, 0
    %p102 = por %p100, %p101
    %s104 = sadd.s32 %s103, 1
    %p107 = scmp.eq.s32.totalorder %s17, 1
    %p108 = scmp.ne.s32.totalorder %s103, %s105
    %p109 = scmp.eq.s32.totalorder %s17, 0
    %p110 = por %p108, %p109
    %p111 = scmp.ne.s32.totalorder %s103, %s105
    %p112 = scmp.eq.s32.totalorder %s22, 1
    %p113 = por %p111, %p112
    %p114 = scmp.ne.s32.totalorder %s105, %s106
    %p115 = scmp.eq.s32.totalorder %s22, 0
    %p116 = por %p114, %p115
    %p117 = scmp.ne.s32.totalorder %s105, %s106
    %p118 = scmp.eq.s32.totalorder %s23, 1
    %p119 = por %p117, %p118
    %p121 = scmp.ne.s32.totalorder %s106, %s120
    %p122 = scmp.eq.s32.totalorder %s23, 0
    %p123 = por %p121, %p122
    %s125 = sadd.s32 %s124, 1
    %p128 = scmp.eq.s32.totalorder %s17, 1
    %p129 = scmp.ne.s32.totalorder %s124, %s126
    %p130 = scmp.eq.s32.totalorder %s17, 0
    %p131 = por %p129, %p130
    %p132 = scmp.ne.s32.totalorder %s124, %s126
    %p133 = scmp.eq.s32.totalorder %s22, 1
    %p134 = por %p132, %p133
    %p135 = scmp.ne.s32.totalorder %s126, %s127
    %p136 = scmp.eq.s32.totalorder %s22, 0
    %p137 = por %p135, %p136
    %p138 = scmp.ne.s32.totalorder %s126, %s127
    %p139 = scmp.eq.s32.totalorder %s23, 1
    %p140 = por %p138, %p139
    %p142 = scmp.ne.s32.totalorder %s127, %s141
    %p143 = scmp.eq.s32.totalorder %s23, 0
    %p144 = por %p142, %p143
    %s146 = sadd.s32 %s145, 1
    %p149 = scmp.eq.s32.totalorder %s17, 1
    %p150 = scmp.ne.s32.totalorder %s145, %s147
    %p151 = scmp.eq.s32.totalorder %s17, 0
    %p152 = por %p150, %p151
    %p153 = scmp.ne.s32.totalorder %s145, %s147
    %p154 = scmp.eq.s32.totalorder %s22, 1
    %p155 = por %p153, %p154
    %p156 = scmp.ne.s32.totalorder %s147, %s148
    %p157 = scmp.eq.s32.totalorder %s22, 0
    %p158 = por %p156, %p157
    %p159 = scmp.ne.s32.totalorder %s147, %s148
    %p160 = scmp.eq.s32.totalorder %s23, 1
    %p161 = por %p159, %p160
    %p163 = scmp.ne.s32.totalorder %s148, %s162
    %p164 = scmp.eq.s32.totalorder %s23, 0
    %p165 = por %p163, %p164
    %s167 = sadd.s32 %s166, 1
    %p170 = scmp.eq.s32.totalorder %s17, 1
    %p171 = scmp.ne.s32.totalorder %s166, %s168
    %p172 = scmp.eq.s32.totalorder %s17, 0
    %p173 = por %p171, %p172
    %p174 = scmp.ne.s32.totalorder %s166, %s168
    %p175 = scmp.eq.s32.totalorder %s22, 1
    %p176 = por %p174, %p175
    %p177 = scmp.ne.s32.totalorder %s168, %s169
    %p178 = scmp.eq.s32.totalorder %s22, 0
    %p179 = por %p177, %p178
    %p180 = scmp.ne.s32.totalorder %s168, %s169
    %p181 = scmp.eq.s32.totalorder %s23, 1
    %p182 = por %p180, %p181
    %p184 = scmp.ne.s32.totalorder %s169, %s183
    %p185 = scmp.eq.s32.totalorder %s23, 0
    %p186 = por %p184, %p185
    %s188 = sadd.s32 %s187, 1
    %p191 = scmp.eq.s32.totalorder %s17, 1
    %p192 = scmp.ne.s32.totalorder %s187, %s189
    %p193 = scmp.eq.s32.totalorder %s17, 0
    %p194 = por %p192, %p193
    %p195 = scmp.ne.s32.totalorder %s187, %s189
    %p196 = scmp.eq.s32.totalorder %s22, 1
    %p197 = por %p195, %p196
    %p198 = scmp.ne.s32.totalorder %s189, %s190
    %p199 = scmp.eq.s32.totalorder %s22, 0
    %p200 = por %p198, %p199
    %p201 = scmp.ne.s32.totalorder %s189, %s190
    %p202 = scmp.eq.s32.totalorder %s23, 1
    %p203 = por %p201, %p202
    %p205 = scmp.ne.s32.totalorder %s190, %s204
    %p206 = scmp.eq.s32.totalorder %s23, 0
    %p207 = por %p205, %p206
    %s209 = sadd.s32 %s208, 1
    %p212 = scmp.eq.s32.totalorder %s17, 1
    %p213 = scmp.ne.s32.totalorder %s208, %s210
    %p214 = scmp.eq.s32.totalorder %s17, 0
    %p215 = por %p213, %p214
    %p216 = scmp.ne.s32.totalorder %s208, %s210
    %p217 = scmp.eq.s32.totalorder %s22, 1
    %p218 = por %p216, %p217
    %p219 = scmp.ne.s32.totalorder %s210, %s211
    %p220 = scmp.eq.s32.totalorder %s22, 0
    %p221 = por %p219, %p220
    %p222 = scmp.ne.s32.totalorder %s210, %s211
    %p223 = scmp.eq.s32.totalorder %s23, 1
    %p224 = por %p222, %p223
    %p226 = scmp.ne.s32.totalorder %s211, %s225
    %p227 = scmp.eq.s32.totalorder %s23, 0
    %p228 = por %p226, %p227
    %s230 = sadd.s32 %s229, 1
    %p233 = scmp.eq.s32.totalorder %s17, 1
    %p234 = scmp.ne.s32.totalorder %s229, %s231
    %p235 = scmp.eq.s32.totalorder %s17, 0
    %p236 = por %p234, %p235
    %p237 = scmp.ne.s32.totalorder %s229, %s231
    %p238 = scmp.eq.s32.totalorder %s22, 1
    %p239 = por %p237, %p238
    %p240 = scmp.ne.s32.totalorder %s231, %s232
    %p241 = scmp.eq.s32.totalorder %s22, 0
    %p242 = por %p240, %p241
    %p243 = scmp.ne.s32.totalorder %s231, %s232
    %p244 = scmp.eq.s32.totalorder %s23, 1
    %p245 = por %p243, %p244
    %p247 = scmp.ne.s32.totalorder %s232, %s246
    %p248 = scmp.eq.s32.totalorder %s23, 0
    %p249 = por %p247, %p248
    %s250 = ssub.s32 %s17, %s24
    %p251 = scmp.eq.s32.totalorder %s250, 0
    %s253 = sadd.s32 %s252, 1
    %s254 = scalar_select %p251, %s252, %s253
    %p257 = pneg %p251
    %p258 = scmp.eq.s32.totalorder %s17, 1
    %p259 = por %p257, %p258
    %p260 = scmp.ne.s32.totalorder %s252, %s255
    %p261 = scmp.eq.s32.totalorder %s17, 0
    %p262 = por %p260, %p261
    %p263 = scmp.ne.s32.totalorder %s252, %s255
    %p264 = scmp.eq.s32.totalorder %s22, 1
    %p265 = por %p263, %p264
    %p266 = scmp.ne.s32.totalorder %s255, %s256
    %p267 = scmp.eq.s32.totalorder %s22, 0
    %p268 = por %p266, %p267
    %p269 = scmp.ne.s32.totalorder %s255, %s256
    %p270 = scmp.eq.s32.totalorder %s23, 1
    %p271 = por %p269, %p270
    %p273 = scmp.ne.s32.totalorder %s256, %s272
    %p274 = scmp.eq.s32.totalorder %s23, 0
    %p275 = por %p273, %p274
    %p276 = scmp.le.s32.totalorder 1, %s17
    %p277 = scmp.lt.s32.totalorder %s17, 3
    %p278 = pnand %p276, %p277
    %p279 = pneg %p278
    // Predicated region
    $region9: #{neumf_forward.1} parent=5 // pred_check
      _
    $region10: #{neumf_forward.1} parent=5 // pred_check_branch
      %281 = sbr.rel (%p278) target = $region12
    $region11: #{neumf_forward.1} parent=5 // pred_region
      %s282 = ssub.s32 %s17, 1
      // Predicated region
      $region13: #{neumf_forward.1} parent=11 // pred_check
        %p283 = pneg %p116
      $region14: #{neumf_forward.1} parent=11 // pred_check_branch
        %285 = sbr.rel (%p283) target = $region16
      $region15: #{neumf_forward.1} parent=11 // pred_region
        _
      $region16: #{neumf_forward.1} parent=11 // pred_fallthru
        _
      // Predicated region
      $region17: #{neumf_forward.1} parent=11 // pred_check
        %p286 = pneg %p137
      $region18: #{neumf_forward.1} parent=11 // pred_check_branch
        %288 = sbr.rel (%p286) target = $region20
      $region19: #{neumf_forward.1} parent=11 // pred_region
        _
      $region20: #{neumf_forward.1} parent=11 // pred_fallthru
        _
      // Predicated region
      $region21: #{neumf_forward.1} parent=11 // pred_check
        %p289 = pneg %p158
      $region22: #{neumf_forward.1} parent=11 // pred_check_branch
        %291 = sbr.rel (%p289) target = $region24
      $region23: #{neumf_forward.1} parent=11 // pred_region
        _
      $region24: #{neumf_forward.1} parent=11 // pred_fallthru
        _
      // Predicated region
      $region25: #{neumf_forward.1} parent=11 // pred_check
        %p292 = pneg %p179
      $region26: #{neumf_forward.1} parent=11 // pred_check_branch
        %294 = sbr.rel (%p292) target = $region28
      $region27: #{neumf_forward.1} parent=11 // pred_region
        _
      $region28: #{neumf_forward.1} parent=11 // pred_fallthru
        _
      // Predicated region
      $region29: #{neumf_forward.1} parent=11 // pred_check
        %p295 = pneg %p200
      $region30: #{neumf_forward.1} parent=11 // pred_check_branch
        %297 = sbr.rel (%p295) target = $region32
      $region31: #{neumf_forward.1} parent=11 // pred_region
        _
      $region32: #{neumf_forward.1} parent=11 // pred_fallthru
        _
      // Predicated region
      $region33: #{neumf_forward.1} parent=11 // pred_check
        %p298 = pneg %p221
      $region34: #{neumf_forward.1} parent=11 // pred_check_branch
        %300 = sbr.rel (%p298) target = $region36
      $region35: #{neumf_forward.1} parent=11 // pred_region
        _
      $region36: #{neumf_forward.1} parent=11 // pred_fallthru
        _
      // Predicated region
      $region37: #{neumf_forward.1} parent=11 // pred_check
        %p301 = pneg %p242
      $region38: #{neumf_forward.1} parent=11 // pred_check_branch
        %303 = sbr.rel (%p301) target = $region40
      $region39: #{neumf_forward.1} parent=11 // pred_region
        _
      $region40: #{neumf_forward.1} parent=11 // pred_fallthru
        _
    $region12: #{neumf_forward.1} parent=5 // pred_fallthru
      _
    %p304 = scmp.lt.s32.totalorder %s17, 2
    // Predicated region
    $region41: #{neumf_forward.1} parent=5 // pred_check
      %p305 = pneg %p304
    $region42: #{neumf_forward.1} parent=5 // pred_check_branch
      %307 = sbr.rel (%p305) target = $region44
    $region43: #{neumf_forward.1} parent=5 // pred_region
      // Predicated region
      $region45: #{neumf_forward.1} parent=43 // pred_check
        %p308 = pneg %p37
      $region46: #{neumf_forward.1} parent=43 // pred_check_branch
        %310 = sbr.rel (%p308) target = $region48
      $region47: #{neumf_forward.1} parent=43 // pred_region
        %s311 = smul.u32 2, %s17
        %p312 = scmp.lt.s32.totalorder %s311, 3
        %s313 = scalar_select %p312, %s311, 3
        %s314 = smul.addr %s313, 4
        %s315 = scalar_lea.vmem %s0, %s314
        %s316 = smul.u32 2, %s17
      $region48: #{neumf_forward.1} parent=43 // pred_fallthru
        _
      // Predicated region
      $region49: #{neumf_forward.1} parent=43 // pred_check
        %p317 = pneg %p63
      $region50: #{neumf_forward.1} parent=43 // pred_check_branch
        %319 = sbr.rel (%p317) target = $region52
      $region51: #{neumf_forward.1} parent=43 // pred_region
        %s320 = smul.u32 2, %s17
        %p321 = scmp.lt.s32.totalorder %s320, 3
        %s322 = scalar_select %p321, %s320, 3
        %s323 = smul.addr %s322, 4
        %s324 = scalar_lea.vmem %s1, %s323
        %s325 = smul.u32 2, %s17
      $region52: #{neumf_forward.1} parent=43 // pred_fallthru
        _
      // Predicated region
      $region53: #{neumf_forward.1} parent=43 // pred_check
        %p326 = pneg %p89
      $region54: #{neumf_forward.1} parent=43 // pred_check_branch
        %328 = sbr.rel (%p326) target = $region56
      $region55: #{neumf_forward.1} parent=43 // pred_region
        %s329 = smul.u32 2, %s17
        %p330 = scmp.lt.s32.totalorder %s329, 3
        %s331 = scalar_select %p330, %s329, 3
        %s332 = smul.addr %s331, 4
        %s333 = scalar_lea.vmem %s2, %s332
        %s334 = smul.u32 2, %s17
      $region56: #{neumf_forward.1} parent=43 // pred_fallthru
        _
    $region44: #{neumf_forward.1} parent=5 // pred_fallthru
      _
    %p335 = scmp.le.s32.totalorder 1, %s17
    %p336 = scmp.lt.s32.totalorder %s17, 3
    %p337 = pnand %p335, %p336
    %p338 = pneg %p337
    // Predicated region
    $region57: #{neumf_forward.1} parent=5 // pred_check
      _
    $region58: #{neumf_forward.1} parent=5 // pred_check_branch
      %340 = sbr.rel (%p337) target = $region60
    $region59: #{neumf_forward.1} parent=5 // pred_region
      %s341 = ssub.s32 %s17, 1
      %s342 = smul.u32 2, %s22
      %p343 = scmp.lt.s32.totalorder %s342, 3
      %s344 = scalar_select %p343, %s342, 3
      %s345 = smul.addr %s344, 4
      %s346 = scalar_lea.vmem %s0, %s345
      %p347 = pneg %p43
      %p348 = pneg %p40
      %s349 = smul.u32 2, %s22
      %p350 = scmp.lt.s32.totalorder %s349, 3
      %s351 = scalar_select %p350, %s349, 3
      %s352 = smul.addr %s351, 4
      %s353 = scalar_lea.vmem %s1, %s352
      %p354 = pneg %p69
      %p355 = pneg %p66
      %s356 = smul.u32 2, %s22
      %p357 = scmp.lt.s32.totalorder %s356, 3
      %s358 = scalar_select %p357, %s356, 3
      %s359 = smul.addr %s358, 4
      %s360 = scalar_lea.vmem %s2, %s359
      %p361 = pneg %p95
      %p362 = pneg %p92
      %p363 = pneg %p116
      %p364 = pneg %p113
      %p365 = pneg %p137
      %p366 = pneg %p134
      %p367 = pneg %p158
      %p368 = pneg %p155
      %p369 = pneg %p179
      %p370 = pneg %p176
      %p371 = pneg %p200
      %p372 = pneg %p197
      %p373 = pneg %p221
      %p374 = pneg %p218
      %p375 = pneg %p242
      %p376 = pneg %p239
      %p377 = pneg %p268
      %p378 = pneg %p265
      %s379 = smul.u32 2, %s22
      %p380 = scmp.lt.s32.totalorder %s379, 3
      %s381 = scalar_select %p380, %s379, 3
      %s382 = smul.addr %s381, 8
      %s383 = scalar_lea.vmem %s10, %s382
      %s384 = smul.u32 2, %s22
      %p385 = scmp.lt.s32.totalorder %s384, 3
      %s386 = scalar_select %p385, %s384, 3
      %s387 = smul.addr %s386, 4
      %s388 = scalar_lea.vmem %s0, %s387
      %s389 = smul.u32 2, %s22
      %s390 = smul.u32 2, %s22
      %p391 = scmp.lt.s32.totalorder %s390, 3
      %s392 = scalar_select %p391, %s390, 3
      %s393 = smul.addr %s392, 4
      %s394 = scalar_lea.vmem %s1, %s393
      %s395 = smul.u32 2, %s22
      %s396 = smul.u32 2, %s22
      %p397 = scmp.lt.s32.totalorder %s396, 3
      %s398 = scalar_select %p397, %s396, 3
      %s399 = smul.addr %s398, 4
      %s400 = scalar_lea.vmem %s2, %s399
      %s401 = smul.u32 2, %s22
      %s402 = smul.u32 2, %s22
      %p403 = scmp.lt.s32.totalorder %s402, 3
      %s404 = scalar_select %p403, %s402, 3
      %s405 = smul.addr %s404, 8
      %s406 = scalar_lea.vmem %s10, %s405
      %s407 = smul.u32 2, %s22
      %v409 = vld [vmem:[%s388] sm:$0xf]
      %v410 = vld [vmem:[%s388 + $0x4] sm:$0xf]
      %v411 = vld [vmem:[%s394] sm:$0xf]
      %v412 = vld [vmem:[%s394 + $0x4] sm:$0xf]
      %v413 = vunpack.c.l.bf16 %v409
      %v414 = vunpack.c.l.bf16 %v410
      %v415 = vunpack.c.l.bf16 %v411
      %v416 = vunpack.c.l.bf16 %v412
      %v417 = vmul.f32 %v413, %v415
      %v418 = vmul.f32 %v414, %v416
      %v419 = vld [vmem:[%s3] sm:$0xf]
      %v420 = vld [vmem:[%s3 + $0x4] sm:$0xf]
      %v421 = vld [vmem:[%s3 + $0x8] sm:$0xf]
      %v422 = vld [vmem:[%s3 + $0xc] sm:$0xf]
      %v423 = vld [vmem:[%s3 + $0x10] sm:$0xf]
      %v424 = vld [vmem:[%s3 + $0x14] sm:$0xf]
      %v425 = vld [vmem:[%s3 + $0x18] sm:$0xf]
      %v426 = vld [vmem:[%s3 + $0x1c] sm:$0xf]
      %v427 = vld [vmem:[%s3 + $0x20] sm:$0xf]
      %v428 = vld [vmem:[%s3 + $0x24] sm:$0xf]
      %v429 = vld [vmem:[%s3 + $0x28] sm:$0xf]
      %v430 = vld [vmem:[%s3 + $0x2c] sm:$0xf]
      %v431 = vld [vmem:[%s3 + $0x30] sm:$0xf]
      %v432 = vld [vmem:[%s3 + $0x34] sm:$0xf]
      %v433 = vld [vmem:[%s3 + $0x38] sm:$0xf]
      %v434 = vld [vmem:[%s3 + $0x3c] sm:$0xf]
      %v435 = vld [vmem:[%s4] sm:$0xf]
      %v436 = vld [vmem:[%s4 + $0x4] sm:$0xf]
      %v437 = vld [vmem:[%s4 + $0x8] sm:$0xf]
      %v438 = vld [vmem:[%s4 + $0xc] sm:$0xf]
      %v439 = vld [vmem:[%s4 + $0x10] sm:$0xf]
      %v440 = vld [vmem:[%s4 + $0x14] sm:$0xf]
      %v441 = vld [vmem:[%s4 + $0x18] sm:$0xf]
      %v442 = vld [vmem:[%s4 + $0x1c] sm:$0xf]
      %v443 = vld [vmem:[%s4 + $0x20] sm:$0xf]
      %v444 = vld [vmem:[%s4 + $0x24] sm:$0xf]
      %v445 = vld [vmem:[%s4 + $0x28] sm:$0xf]
      %v446 = vld [vmem:[%s4 + $0x2c] sm:$0xf]
      %v447 = vld [vmem:[%s4 + $0x30] sm:$0xf]
      %v448 = vld [vmem:[%s4 + $0x34] sm:$0xf]
      %v449 = vld [vmem:[%s4 + $0x38] sm:$0xf]
      %v450 = vld [vmem:[%s4 + $0x3c] sm:$0xf]
      %v453 = vunpack.c.l.b16 %v411
      %v454 = vunpack.c.l.b16 %v412
      %v455 = vpack.c.b16 %v454, %v453
      %v473 = vunpack.c.l.b16 %v435
      %v474 = vunpack.c.l.b16 %v436
      %v475 = vunpack.c.l.b16 %v437
      %v476 = vunpack.c.l.b16 %v438
      %v477 = vunpack.c.l.b16 %v439
      %v478 = vunpack.c.l.b16 %v440
      %v479 = vunpack.c.l.b16 %v441
      %v480 = vunpack.c.l.b16 %v442
      %v481 = vunpack.c.l.b16 %v443
      %v482 = vunpack.c.l.b16 %v444
      %v483 = vunpack.c.l.b16 %v445
      %v484 = vunpack.c.l.b16 %v446
      %v485 = vunpack.c.l.b16 %v447
      %v486 = vunpack.c.l.b16 %v448
      %v487 = vunpack.c.l.b16 %v449
      %v488 = vunpack.c.l.b16 %v450
      %v489 = vpack.c.b16 %v474, %v473
      %v490 = vpack.c.b16 %v476, %v475
      %v491 = vpack.c.b16 %v478, %v477
      %v492 = vpack.c.b16 %v480, %v479
      %v493 = vpack.c.b16 %v482, %v481
      %v494 = vpack.c.b16 %v484, %v483
      %v495 = vpack.c.b16 %v486, %v485
      %v496 = vpack.c.b16 %v488, %v487
      %505 = vmatprep.subr.bf16.mxu0 0
      %506 = vmatpush1.bf16.msra.mxu0 %v496
      %507 = vmatprep.subr.bf16.mxu0 0
      %508 = vmatpush1.bf16.msra.mxu0 %v495
      %509 = vmatprep.subr.bf16.mxu0 0
      %510 = vmatpush1.bf16.msra.mxu0 %v494
      %511 = vmatprep.subr.bf16.mxu0 0
      %512 = vmatpush1.bf16.msra.mxu0 %v493
      %513 = vmatprep.subr.bf16.mxu0 0
      %514 = vmatpush1.bf16.msra.mxu0 %v492
      %515 = vmatprep.subr.bf16.mxu0 0
      %516 = vmatpush1.bf16.msra.mxu0 %v491
      %517 = vmatprep.subr.bf16.mxu0 0
      %518 = vmatpush1.bf16.msra.mxu0 %v490
      %519 = vmatprep.subr.bf16.mxu0 0
      %520 = vmatpush1.bf16.msra.mxu0 %v489
      %521 = vmatprep.subr.bf16.mxu0 0
      %522 = vmatpush2.bf16.msra.mxu0 0
      %523 = vmatprep.subr.bf16.mxu0 0
      %524 = vmatpush2.bf16.msra.mxu0 0
      %525 = vmatprep.subr.bf16.mxu0 0
      %526 = vmatpush2.bf16.msra.mxu0 0
      %527 = vmatprep.subr.bf16.mxu0 0
      %528 = vmatpush2.bf16.msra.mxu0 0
      %529 = vmatprep.subr.bf16.mxu0 0
      %530 = vmatpush2.bf16.msra.mxu0 0
      %531 = vmatprep.subr.bf16.mxu0 0
      %532 = vmatpush2.bf16.msra.mxu0 0
      %533 = vmatprep.subr.bf16.mxu0 0
      %534 = vmatpush2.bf16.msra.mxu0 0
      %535 = vmatprep.subr.bf16.mxu0 0
      %536 = vmatpush2.bf16.msra.mxu0 0
      %537 = vmatprep.mubr.bf16.mxu0 0
      %538 = vmatmul.mubr.bf16.gmra.mxu0 %v455
      %v539 = vpop.f32.mrf.mxu0
      %v540 = vadd.f32 0.0, %v539
      %v541 = vpop.f32.mrf.mxu0
      %v542 = vpop.f32.mrf.mxu0
      %v543 = vadd.f32 0.0, %v542
      %v544 = vpop.f32.mrf.mxu0
      %545 = vdwg.mxu0
      %v548 = vunpack.c.l.b16 %v409
      %v549 = vunpack.c.l.b16 %v410
      %v550 = vpack.c.b16 %v549, %v548
      %v568 = vunpack.c.l.b16 %v419
      %v569 = vunpack.c.l.b16 %v420
      %v570 = vunpack.c.l.b16 %v421
      %v571 = vunpack.c.l.b16 %v422
      %v572 = vunpack.c.l.b16 %v423
      %v573 = vunpack.c.l.b16 %v424
      %v574 = vunpack.c.l.b16 %v425
      %v575 = vunpack.c.l.b16 %v426
      %v576 = vunpack.c.l.b16 %v427
      %v577 = vunpack.c.l.b16 %v428
      %v578 = vunpack.c.l.b16 %v429
      %v579 = vunpack.c.l.b16 %v430
      %v580 = vunpack.c.l.b16 %v431
      %v581 = vunpack.c.l.b16 %v432
      %v582 = vunpack.c.l.b16 %v433
      %v583 = vunpack.c.l.b16 %v434
      %v584 = vpack.c.b16 %v569, %v568
      %v585 = vpack.c.b16 %v571, %v570
      %v586 = vpack.c.b16 %v573, %v572
      %v587 = vpack.c.b16 %v575, %v574
      %v588 = vpack.c.b16 %v577, %v576
      %v589 = vpack.c.b16 %v579, %v578
      %v590 = vpack.c.b16 %v581, %v580
      %v591 = vpack.c.b16 %v583, %v582
      %600 = vmatprep.subr.bf16.mxu0 0
      %601 = vmatpush1.bf16.msra.mxu0 %v591
      %602 = vmatprep.subr.bf16.mxu0 0
      %603 = vmatpush1.bf16.msra.mxu0 %v590
      %604 = vmatprep.subr.bf16.mxu0 0
      %605 = vmatpush1.bf16.msra.mxu0 %v589
      %606 = vmatprep.subr.bf16.mxu0 0
      %607 = vmatpush1.bf16.msra.mxu0 %v588
      %608 = vmatprep.subr.bf16.mxu0 0
      %609 = vmatpush1.bf16.msra.mxu0 %v587
      %610 = vmatprep.subr.bf16.mxu0 0
      %611 = vmatpush1.bf16.msra.mxu0 %v586
      %612 = vmatprep.subr.bf16.mxu0 0
      %613 = vmatpush1.bf16.msra.mxu0 %v585
      %614 = vmatprep.subr.bf16.mxu0 0
      %615 = vmatpush1.bf16.msra.mxu0 %v584
      %616 = vmatprep.subr.bf16.mxu0 0
      %617 = vmatpush2.bf16.msra.mxu0 0
      %618 = vmatprep.subr.bf16.mxu0 0
      %619 = vmatpush2.bf16.msra.mxu0 0
      %620 = vmatprep.subr.bf16.mxu0 0
      %621 = vmatpush2.bf16.msra.mxu0 0
      %622 = vmatprep.subr.bf16.mxu0 0
      %623 = vmatpush2.bf16.msra.mxu0 0
      %624 = vmatprep.subr.bf16.mxu0 0
      %625 = vmatpush2.bf16.msra.mxu0 0
      %626 = vmatprep.subr.bf16.mxu0 0
      %627 = vmatpush2.bf16.msra.mxu0 0
      %628 = vmatprep.subr.bf16.mxu0 0
      %629 = vmatpush2.bf16.msra.mxu0 0
      %630 = vmatprep.subr.bf16.mxu0 0
      %631 = vmatpush2.bf16.msra.mxu0 0
      %632 = vmatprep.mubr.bf16.mxu0 0
      %633 = vmatmul.mubr.bf16.gmra.mxu0 %v550
      %v634 = vpop.f32.mrf.mxu0
      %v635 = vadd.f32 %v540, %v634
      %v636 = vpop.f32.mrf.mxu0
      %v637 = vpop.f32.mrf.mxu0
      %v638 = vadd.f32 %v543, %v637
      %v639 = vpop.f32.mrf.mxu0
      %640 = vdwg.mxu0
      %v641 = vld [vmem:[%s400] sm:$0xf]
      %v642 = vld [vmem:[%s400 + $0x4] sm:$0xf]
      %v643 = vld [vmem:[%s5] sm:$0xf]
      %v644 = vld [vmem:[%s5 + $0x4] sm:$0xf]
      %v645 = vld [vmem:[%s5 + $0x8] sm:$0xf]
      %v646 = vld [vmem:[%s5 + $0xc] sm:$0xf]
      %v649 = vunpack.c.l.b16 %v641
      %v650 = vunpack.c.l.b16 %v642
      %v651 = vpack.c.b16 %v650, %v649
      %v656 = vunpack.c.l.b16 %v643
      %v657 = vunpack.c.l.b16 %v644
      %v658 = vunpack.c.l.b16 %v645
      %v659 = vunpack.c.l.b16 %v646
      %v660 = vpack.c.b16 %v657, %v656
      %v661 = vpack.c.b16 %v659, %v658
      %vm664 = vcmask 261120
      %v666 = vsel %vm664, %v651, 0
      %668 = vmatprep.subr.bf16.mxu0 0
      %669 = vmatpush1.bf16.msra.mxu0 0
      %670 = vmatprep.subr.bf16.mxu0 0
      %671 = vmatpush1.bf16.msra.mxu0 0
      %672 = vmatprep.subr.bf16.mxu0 0
      %673 = vmatpush1.bf16.msra.mxu0 0
      %674 = vmatprep.subr.bf16.mxu0 0
      %675 = vmatpush1.bf16.msra.mxu0 0
      %676 = vmatprep.subr.bf16.mxu0 0
      %677 = vmatpush1.bf16.msra.mxu0 0
      %678 = vmatprep.subr.bf16.mxu0 0
      %679 = vmatpush1.bf16.msra.mxu0 0
      %680 = vmatprep.subr.bf16.mxu0 0
      %681 = vmatpush1.bf16.msra.mxu0 %v661
      %682 = vmatprep.subr.bf16.mxu0 0
      %683 = vmatpush1.bf16.msra.mxu0 %v660
      %684 = vmatprep.subr.bf16.mxu0 0
      %685 = vmatpush2.bf16.msra.mxu0 0
      %686 = vmatprep.subr.bf16.mxu0 0
      %687 = vmatpush2.bf16.msra.mxu0 0
      %688 = vmatprep.subr.bf16.mxu0 0
      %689 = vmatpush2.bf16.msra.mxu0 0
      %690 = vmatprep.subr.bf16.mxu0 0
      %691 = vmatpush2.bf16.msra.mxu0 0
      %692 = vmatprep.subr.bf16.mxu0 0
      %693 = vmatpush2.bf16.msra.mxu0 0
      %694 = vmatprep.subr.bf16.mxu0 0
      %695 = vmatpush2.bf16.msra.mxu0 0
      %696 = vmatprep.subr.bf16.mxu0 0
      %697 = vmatpush2.bf16.msra.mxu0 0
      %698 = vmatprep.subr.bf16.mxu0 0
      %699 = vmatpush2.bf16.msra.mxu0 0
      %700 = vmatprep.mubr.bf16.mxu0 0
      %701 = vmatmul.mubr.bf16.gmra.mxu0 %v666
      %v702 = vpop.f32.mrf.mxu0
      %v703 = vadd.f32 0.0, %v702
      %v704 = vpop.f32.mrf.mxu0
      %v705 = vpop.f32.mrf.mxu0
      %v706 = vadd.f32 0.0, %v705
      %v707 = vpop.f32.mrf.mxu0
      %708 = vdwg.mxu0
      %v709 = vadd.f32 %v635, %v703
      %v710 = vadd.f32 %v638, %v706
      %v711 = vld [vmem:[%s6] sm:$0x1]
      %v713 = vlaneseq
      %v714 = vshrl.u32 %v713, 7
      %v715 = vsub.s32 0, %v714
      %v716 = vrot.slane %v711, %v715
      %v718 = vadd.f32 %v709, %v716
      %v719 = vadd.f32 %v710, %v716
      %v720 = vmax.f32 %v718, 0.0
      %v721 = vmax.f32 %v719, 0.0
      %v722 = vld [vmem:[%s7] sm:$0x1]
      %v724 = vlaneseq
      %v725 = vshrl.u32 %v724, 7
      %v726 = vsub.s32 0, %v725
      %v727 = vrot.slane %v722, %v726
      %v729 = vmul.f32 %v417, %v727
      %v730 = vmul.f32 %v418, %v727
      %731 = vadd.xlane.f32.xlu0 %v729
      %v732 = vpop.xlane.xlu0 %731
      %733 = vadd.xlane.f32.xlu0 %v730
      %v734 = vpop.xlane.xlu0 %733
      %v735 = vld [vmem:[%s8] sm:$0x1]
      %v737 = vlaneseq
      %v738 = vshrl.u32 %v737, 7
      %v739 = vsub.s32 0, %v738
      %v740 = vrot.slane %v735, %v739
      %v742 = vmul.f32 %v720, %v740
      %v743 = vmul.f32 %v721, %v740
      %vm744 = vcmask 523264
      %v745 = vsel %vm744, %v742, 0.0
      %746 = vadd.xlane.f32.xlu0 %v745
      %v747 = vpop.xlane.xlu0 %746
      %v748 = vsel %vm744, %v743, 0.0
      %749 = vadd.xlane.f32.xlu0 %v748
      %v750 = vpop.xlane.xlu0 %749
      %v751 = vadd.f32 %v732, %v747
      %v752 = vadd.f32 %v734, %v750
      %s753 = sld [smem:[#allocation2]]
      %v754 = vstv %s753
      %v755 = vadd.f32 %v751, %v754
      %v756 = vadd.f32 %v752, %v754
      %vm757 = vcmask 7168
      %758 = vst.msk [vmem:[%s406] sm:$0xff] %vm757, %v755
      %759 = vst.msk [vmem:[%s406 + $0x8] sm:$0xff] %vm757, %v756
      %s760 = smul.u32 2, %s22
      %p761 = scmp.lt.s32.totalorder %s760, 3
      %s762 = scalar_select %p761, %s760, 3
      %s763 = smul.addr %s762, 8
      %s764 = scalar_lea.vmem %s10, %s763
      // Predicated region
      $region61: #{neumf_forward.1} parent=59 // pred_check
        %p765 = pneg %p265
      $region62: #{neumf_forward.1} parent=59 // pred_check_branch
        %767 = sbr.rel (%p765) target = $region64
      $region63: #{neumf_forward.1} parent=59 // pred_region
        %s768 = smul.u32 2, %s22
      $region64: #{neumf_forward.1} parent=59 // pred_fallthru
        _
    $region60: #{neumf_forward.1} parent=5 // pred_fallthru
      _
    %p769 = scmp.le.s32.totalorder 2, %s17
    // Predicated region
    $region65: #{neumf_forward.1} parent=5 // pred_check
      %p770 = pneg %p769
    $region66: #{neumf_forward.1} parent=5 // pred_check_branch
      %772 = sbr.rel (%p770) target = $region68
    $region67: #{neumf_forward.1} parent=5 // pred_region
      %s773 = ssub.s32 %s17, 2
      // Predicated region
      $region69: #{neumf_forward.1} parent=67 // pred_check
        %p774 = pneg %p271
      $region70: #{neumf_forward.1} parent=67 // pred_check_branch
        %776 = sbr.rel (%p774) target = $region72
      $region71: #{neumf_forward.1} parent=67 // pred_region
        %s777 = smul.u32 2, %s23
        %p778 = scmp.lt.s32.totalorder %s777, 3
        %s779 = scalar_select %p778, %s777, 3
        %s780 = smul.addr %s779, 8
        %s781 = scalar_lea.vmem %s10, %s780
      $region72: #{neumf_forward.1} parent=67 // pred_fallthru
        _
    $region68: #{neumf_forward.1} parent=5 // pred_fallthru
      _
  $region6: #{neumf_forward.1} parent=0 // loop_footer
    %s21 = sadd.s32 1, %s17
  $region7: #{neumf_forward.1} parent=0 // loop_footer_branch
    %16 = sbr.rel target = $region3
  $region8: #{neumf_forward.1} parent=0 // loop_exit
    _

</llo_original>
